<compile_context>
chip_gen: v7x
topology: tpu7x:2x2x1
jax: 0.10.0
libtpu: 0.0.40
codegen_flags: <defaults>
</compile_context>

<pallas_src>
import functools

import jax
import jax.numpy as jnp
from jax.experimental import pallas as pl
from jax.experimental.pallas import tpu as pltpu


def _round_up(x, m):
    return -(-x // m) * m


# ----------------------------------------------------------------------------
# Pallas kernel: fused CRU forward for one batch element
# ----------------------------------------------------------------------------
def _cru_kernel(xup_ref, xlow_ref, wsq1_ref, wsq2_ref, wgwc_ref, bgwc_ref,
                wpwc2e_ref, mask_ref, out_ref, *, Wp, pad, npad_al, inv_hw):
    """Channels on sublanes, zero-padded flat pixels on lanes (N = Npad_al).

    xup_ref:    (1, Cup,  N)     bf16  upper channel split (halo lanes zero)
    xlow_ref:   (1, Clow, N)     bf16  lower channel split
    wsq1_ref:   (Cups_al, Cup)   bf16  squeeze1 (out,in), zero-padded rows
    wsq2_ref:   (Clows_al, Clow) bf16  squeeze2
    wgwc_ref:   (Cop, 9*Cups_al) bf16  dense block-diag GWC taps + PWC1 folded in
    bgwc_ref:   (Cop, 1)         f32   GWC bias
    wpwc2e_ref: (Cop, Clows_al)  bf16  [PWC2 ; I]  => Y2 = W_ext @ low_sq
    mask_ref:   (1, N)           f32   1 on interior pixels, 0 on halo/pad lanes
    out_ref:    (1, Cop, N)      f32   a1*Y1 + a2*Y2 (halo lanes junk -> cropped)
    """
    f32 = jnp.float32
    bf16 = jnp.bfloat16

    # ---- upper branch: squeeze1 (1x1, no bias -> halo lanes stay zero) ------
    up_sq = jnp.dot(wsq1_ref[...], xup_ref[0], preferred_element_type=f32)

    # im2col via lane rolls (XLU slot): shifted_k[:, i] = up_sq[:, i + dy*Wp+dx]
    # for every interior pixel i (the circular wrap never reaches the interior
    # because |dy*Wp+dx| <= pad*(Wp+1)); halo lanes of up_sq are zero so this
    # exactly matches the zero-padded 3x3 conv.
    taps = []
    for dy in range(-pad, pad + 1):
        for dx in range(-pad, pad + 1):
            off = dy * Wp + dx
            if off == 0:
                taps.append(up_sq)
            else:
                taps.append(pltpu.roll(up_sq, (-off) % npad_al, axis=1))
    im2col = jnp.concatenate(taps, axis=0).astype(bf16)       # (9*Cups_al, N)

    # Fused GWC (+ PWC1 folded into the centre tap) as ONE MXU matmul + bias.
    y1 = jnp.dot(wgwc_ref[...], im2col, preferred_element_type=f32) + bgwc_ref[...]

    # ---- lower branch: Y2 = cat([PWC2(low_sq), low_sq]) = [W ; I] @ low_sq ---
    low_sq = jnp.dot(wsq2_ref[...], xlow_ref[0], preferred_element_type=f32)
    y2 = jnp.dot(wpwc2e_ref[...], low_sq.astype(bf16), preferred_element_type=f32)

    # ---- channel attention: softmax over the 2*Cop pooled interior means ----
    mask = mask_ref[...]                                       # (1, N) f32
    p1 = jnp.sum(y1 * mask, axis=1, keepdims=True) * inv_hw    # (Cop, 1)
    p2 = jnp.sum(y2 * mask, axis=1, keepdims=True) * inv_hw
    m = jnp.maximum(jnp.max(p1, axis=0, keepdims=True),
                    jnp.max(p2, axis=0, keepdims=True))        # (1, 1)
    e1 = jnp.exp(p1 - m)
    e2 = jnp.exp(p2 - m)
    denom = (jnp.sum(e1, axis=0, keepdims=True)
             + jnp.sum(e2, axis=0, keepdims=True))
    inv_d = pl.reciprocal(denom, approx=True)
    a1 = e1 * inv_d
    a2 = e2 * inv_d

    # out1 + out2 of the attended concat == a1*Y1 + a2*Y2
    out_ref[0] = (y1 * a1 + y2 * a2).astype(out_ref.dtype)


# ----------------------------------------------------------------------------
# Wrapper: layout prep (cheap XLA, no transposes) + single fused pallas_call
# ----------------------------------------------------------------------------
def cru_forward(x, prepped, op_channel, alpha=0.5, squeeze_radio=2,
                group_size=2, group_kernel_size=3):
    B, C, H, W = x.shape
    assert C == op_channel, (C, op_channel)
    up_c = int(alpha * op_channel)
    low_c = op_channel - up_c
    up_s = up_c // squeeze_radio
    low_s = low_c // squeeze_radio
    up_s_al = _round_up(up_s, 8)
    low_s_al = _round_up(low_s, 8)
    pad = group_kernel_size // 2
    kk = group_kernel_size * group_kernel_size
    Hp, Wp = H + 2 * pad, W + 2 * pad
    Npad = Hp * Wp
    Npad_al = _round_up(Npad, 128)        # lane-dense output / aligned rolls

    # NCHW -> zero-padded flat (B, C, Npad_al), bf16 (halves input HBM traffic)
    xb = x.astype(jnp.bfloat16)
    x_flat = jnp.pad(xb, ((0, 0), (0, 0), (pad, pad), (pad, pad)))
    x_flat = x_flat.reshape(B, C, Npad)
    x_flat = jnp.pad(x_flat, ((0, 0), (0, 0), (0, Npad_al - Npad)))
    x_up = x_flat[:, :up_c]
    x_low = x_flat[:, up_c:]

    # Interior mask (hoisted out of the kernel): 1 on real pixels, 0 elsewhere.
    mask2d = jnp.zeros((Hp, Wp), jnp.float32).at[pad:pad + H, pad:pad + W].set(1.0)
    mask = jnp.pad(mask2d.reshape(1, Npad), ((0, 0), (0, Npad_al - Npad)))

    kernel = functools.partial(_cru_kernel, Wp=Wp, pad=pad, npad_al=Npad_al,
                               inv_hw=1.0 / float(H * W))
    out_pad = pl.pallas_call(
        kernel,
        out_shape=jax.ShapeDtypeStruct((B, op_channel, Npad_al), jnp.float32),
        grid=(B,),
        in_specs=[
            pl.BlockSpec((1, up_c, Npad_al), lambda b: (b, 0, 0)),
            pl.BlockSpec((1, low_c, Npad_al), lambda b: (b, 0, 0)),
            pl.BlockSpec((up_s_al, up_c), lambda b: (0, 0)),
            pl.BlockSpec((low_s_al, low_c), lambda b: (0, 0)),
            pl.BlockSpec((op_channel, kk * up_s_al), lambda b: (0, 0)),
            pl.BlockSpec((op_channel, 1), lambda b: (0, 0)),
            pl.BlockSpec((op_channel, low_s_al), lambda b: (0, 0)),
            pl.BlockSpec((1, Npad_al), lambda b: (0, 0)),
        ],
        out_specs=pl.BlockSpec((1, op_channel, Npad_al), lambda b: (b, 0, 0)),
        compiler_params=pltpu.CompilerParams(
            dimension_semantics=("parallel",)),
    )(x_up, x_low, prepped["w_sq1"], prepped["w_sq2"], prepped["w_gwc"],
      prepped["b_gwc"], prepped["w_pwc2_ext"], mask)

    # Crop halo + alignment lanes; already NCHW so no transpose needed.
    out = out_pad[:, :, :Npad].reshape(B, op_channel, Hp, Wp)
    return out[:, :, pad:pad + H, pad:pad + W]


# ----------------------------------------------------------------------------
# Parameter init (PyTorch layouts) + one-time prep for the kernel
# ----------------------------------------------------------------------------
def init_params(key, op_channel, alpha=0.5, squeeze_radio=2, group_size=2,
                group_kernel_size=3):
    up_c = int(alpha * op_channel)
    low_c = op_channel - up_c
    up_s = up_c // squeeze_radio
    low_s = low_c // squeeze_radio

    def u(k, shape, fan_in):
        b = 1.0 / (fan_in ** 0.5)
        return jax.random.uniform(k, shape, jnp.float32, -b, b)

    ks = jax.random.split(key, 6)
    g_fan = (up_s // group_size) * group_kernel_size * group_kernel_size
    return dict(
        squeeze1_w=u(ks[0], (up_s, up_c, 1, 1), up_c),
        squeeze2_w=u(ks[1], (low_s, low_c, 1, 1), low_c),
        gwc_w=u(ks[2], (op_channel, up_s // group_size,
                        group_kernel_size, group_kernel_size), g_fan),
        gwc_b=u(ks[3], (op_channel,), g_fan),
        pwc1_w=u(ks[4], (op_channel, up_s, 1, 1), up_s),
        pwc2_w=u(ks[5], (op_channel - low_s, low_s, 1, 1), low_s),
    )


def prepare_params(raw, op_channel, alpha=0.5, squeeze_radio=2, group_size=2,
                   group_kernel_size=3):
    """Fold / transpose / pad weights ONCE so the kernel only does dense matmuls."""
    up_c = int(alpha * op_channel)
    low_c = op_channel - up_c
    up_s = up_c // squeeze_radio
    low_s = low_c // squeeze_radio
    up_s_al = _round_up(up_s, 8)
    low_s_al = _round_up(low_s, 8)
    kk = group_kernel_size * group_kernel_size
    bf16 = jnp.bfloat16

    # squeeze convs, used as LHS of  W @ x  (out-major), rows padded to 8.
    w_sq1 = jnp.zeros((up_s_al, up_c), jnp.float32)
    w_sq1 = w_sq1.at[:up_s].set(raw["squeeze1_w"][:, :, 0, 0])
    w_sq2 = jnp.zeros((low_s_al, low_c), jnp.float32)
    w_sq2 = w_sq2.at[:low_s].set(raw["squeeze2_w"][:, :, 0, 0])

    # Grouped 3x3 conv -> dense block-diagonal per-tap matrices (kk, Cop, Cups_al)
    w = raw["gwc_w"]                        # (Cop, Cups/g, kh, kw) PyTorch OIHW
    cout_g = op_channel // group_size
    cin_g = up_s // group_size
    dense = jnp.zeros((kk, op_channel, up_s_al), jnp.float32)
    for g in range(group_size):
        blk = w[g * cout_g:(g + 1) * cout_g]            # (cout_g, cin_g, kh, kw)
        blk = jnp.transpose(blk, (2, 3, 0, 1)).reshape(kk, cout_g, cin_g)
        dense = dense.at[:, g * cout_g:(g + 1) * cout_g,
                         g * cin_g:(g + 1) * cin_g].set(blk)
    # Fold PWC1 (dense 1x1) into the centre tap -> one fewer matmul in-kernel.
    center = (group_kernel_size // 2) * group_kernel_size + group_kernel_size // 2
    dense = dense.at[center, :, :up_s].add(raw["pwc1_w"][:, :, 0, 0])
    w_gwc = jnp.transpose(dense, (1, 0, 2)).reshape(op_channel, kk * up_s_al)

    # Fold torch.cat([PWC2(low), low], C) into a single matmul:  [W ; I]
    w_ext = jnp.concatenate(
        [raw["pwc2_w"][:, :, 0, 0], jnp.eye(low_s, dtype=jnp.float32)], axis=0)
    w_pwc2_ext = jnp.zeros((op_channel, low_s_al), jnp.float32)
    w_pwc2_ext = w_pwc2_ext.at[:, :low_s].set(w_ext)

    return dict(
        w_sq1=w_sq1.astype(bf16),
        w_sq2=w_sq2.astype(bf16),
        w_gwc=w_gwc.astype(bf16),
        b_gwc=raw["gwc_b"].reshape(op_channel, 1).astype(jnp.float32),
        w_pwc2_ext=w_pwc2_ext.astype(bf16),
    )


# ----------------------------------------------------------------------------
# Pure-JAX reference (PyTorch semantics, f32) for the correctness check
# ----------------------------------------------------------------------------
def _conv2d(x, w, padding="VALID", groups=1):
    return jax.lax.conv_general_dilated(
        x, w, window_strides=(1, 1), padding=padding,
        dimension_numbers=("NCHW", "OIHW", "NCHW"),
        feature_group_count=groups, precision=jax.lax.Precision.HIGHEST)


def cru_reference(x, raw, op_channel, alpha=0.5, squeeze_radio=2, group_size=2,
                  group_kernel_size=3):
    up_c = int(alpha * op_channel)
    pad = group_kernel_size // 2
    x = x.astype(jnp.float32)
    up, low = x[:, :up_c], x[:, up_c:]
    up = _conv2d(up, raw["squeeze1_w"])
    low = _conv2d(low, raw["squeeze2_w"])
    gwc = _conv2d(up, raw["gwc_w"], padding=((pad, pad), (pad, pad)),
                  groups=group_size) + raw["gwc_b"][None, :, None, None]
    y1 = gwc + _conv2d(up, raw["pwc1_w"])
    y2 = jnp.concatenate([_conv2d(low, raw["pwc2_w"]), low], axis=1)
    out = jnp.concatenate([y1, y2], axis=1)
    att = jax.nn.softmax(jnp.mean(out, axis=(2, 3), keepdims=True), axis=1)
    out = att * out
    out1, out2 = out[:, :op_channel], out[:, op_channel:]
    return out1 + out2


# ----------------------------------------------------------------------------
if __name__ == "__main__":
    B, H, W = 2, 16, 16
    op_channel = 16  # keeps (alpha*C)//squeeze_radio divisible by group_size=2

    key = jax.random.PRNGKey(0)
    kx, kp = jax.random.split(key)
    x = jax.random.normal(kx, (B, op_channel, H, W), jnp.float32)

    raw = init_params(kp, op_channel)
    prepped = prepare_params(raw, op_channel)

    out = jax.block_until_ready(cru_forward(x, prepped, op_channel))
    assert out.shape == (B, op_channel, H, W), out.shape

    ref = jax.block_until_ready(cru_reference(x, raw, op_channel))
    # Tolerance covers bf16 MXU inputs (f32 accumulation) vs the f32 reference.
    assert jnp.allclose(out, ref, rtol=5e-2, atol=5e-3), \
        float(jnp.max(jnp.abs(out - ref)))

    print("KERNEL_OK")
</pallas_src>

<mosaic_0001>
module attributes {stable_mosaic.version = 11 : i64} {
  func.func @_cru_kernel(%arg0: i32, %arg1: memref<1x8x384xbf16, #tpu.memory_space<vmem>>, %arg2: memref<1x8x384xbf16, #tpu.memory_space<vmem>>, %arg3: memref<8x8xbf16, #tpu.memory_space<vmem>>, %arg4: memref<8x8xbf16, #tpu.memory_space<vmem>>, %arg5: memref<16x72xbf16, #tpu.memory_space<vmem>>, %arg6: memref<16x1xf32, #tpu.memory_space<vmem>>, %arg7: memref<16x8xbf16, #tpu.memory_space<vmem>>, %arg8: memref<1x384xf32, #tpu.memory_space<vmem>>, %arg9: memref<1x16x384xf32, #tpu.memory_space<vmem>>) attributes {dimension_semantics = [#tpu.dimension_semantics<parallel>], iteration_bounds = array<i64: 2>, scalar_prefetch = 0 : i64, scratch_operands = 0 : i64, tpu.core_type = #tpu.core_type<tc>, window_params = [{transform_indices = @transform_0, window_bounds = array<i64: 1, 8, 384>}, {transform_indices = @transform_1, window_bounds = array<i64: 1, 8, 384>}, {pipeline_mode = #tpu.pipeline_mode<synchronous>, transform_indices = @transform_2, window_bounds = array<i64: 8, 8>}, {pipeline_mode = #tpu.pipeline_mode<synchronous>, transform_indices = @transform_3, window_bounds = array<i64: 8, 8>}, {pipeline_mode = #tpu.pipeline_mode<synchronous>, transform_indices = @transform_4, window_bounds = array<i64: 16, 72>}, {pipeline_mode = #tpu.pipeline_mode<synchronous>, transform_indices = @transform_5, window_bounds = array<i64: 16, 1>}, {pipeline_mode = #tpu.pipeline_mode<synchronous>, transform_indices = @transform_6, window_bounds = array<i64: 16, 8>}, {pipeline_mode = #tpu.pipeline_mode<synchronous>, transform_indices = @transform_7, window_bounds = array<i64: 1, 384>}, {transform_indices = @transform_8, window_bounds = array<i64: 1, 16, 384>}]} {
    %c0 = arith.constant 0 : index
    %c0_0 = arith.constant 0 : index
    %0 = vector.load %arg3[%c0, %c0_0] : memref<8x8xbf16, #tpu.memory_space<vmem>>, vector<8x8xbf16>
    %c0_1 = arith.constant 0 : index
    %c0_2 = arith.constant 0 : index
    %c0_3 = arith.constant 0 : index
    %1 = vector.load %arg1[%c0_1, %c0_2, %c0_3] : memref<1x8x384xbf16, #tpu.memory_space<vmem>>, vector<1x8x384xbf16>
    %2 = vector.shape_cast %1 : vector<1x8x384xbf16> to vector<8x384xbf16>
    %cst = arith.constant dense<0.000000e+00> : vector<8x384xf32>
    %3 = tpu.matmul %0, %2, %cst {dimension_numbers = #tpu.dot_dimension_numbers<[1], [0], [0], [1], [0, 0, 1, 1], [], []>} : vector<8x8xbf16>, vector<8x384xbf16>, vector<8x384xf32> -> vector<8x384xf32>
    %c19_i32 = arith.constant 19 : i32
    %4 = tpu.dynamic_rotate %3 by %c19_i32 dim 1 : vector<8x384xf32>, i32 -> vector<8x384xf32>
    %c18_i32 = arith.constant 18 : i32
    %5 = tpu.dynamic_rotate %3 by %c18_i32 dim 1 : vector<8x384xf32>, i32 -> vector<8x384xf32>
    %c17_i32 = arith.constant 17 : i32
    %6 = tpu.dynamic_rotate %3 by %c17_i32 dim 1 : vector<8x384xf32>, i32 -> vector<8x384xf32>
    %c1_i32 = arith.constant 1 : i32
    %7 = tpu.dynamic_rotate %3 by %c1_i32 dim 1 : vector<8x384xf32>, i32 -> vector<8x384xf32>
    %c383_i32 = arith.constant 383 : i32
    %8 = tpu.dynamic_rotate %3 by %c383_i32 dim 1 : vector<8x384xf32>, i32 -> vector<8x384xf32>
    %c367_i32 = arith.constant 367 : i32
    %9 = tpu.dynamic_rotate %3 by %c367_i32 dim 1 : vector<8x384xf32>, i32 -> vector<8x384xf32>
    %c366_i32 = arith.constant 366 : i32
    %10 = tpu.dynamic_rotate %3 by %c366_i32 dim 1 : vector<8x384xf32>, i32 -> vector<8x384xf32>
    %c365_i32 = arith.constant 365 : i32
    %11 = tpu.dynamic_rotate %3 by %c365_i32 dim 1 : vector<8x384xf32>, i32 -> vector<8x384xf32>
    %12 = tpu.concatenate %4, %5, %6, %7, %3, %8, %9, %10, %11 in 0 : vector<8x384xf32>, vector<8x384xf32>, vector<8x384xf32>, vector<8x384xf32>, vector<8x384xf32>, vector<8x384xf32>, vector<8x384xf32>, vector<8x384xf32>, vector<8x384xf32> -> vector<72x384xf32>
    %13 = arith.truncf %12 : vector<72x384xf32> to vector<72x384xbf16>
    %c0_4 = arith.constant 0 : index
    %c0_5 = arith.constant 0 : index
    %14 = vector.load %arg5[%c0_4, %c0_5] : memref<16x72xbf16, #tpu.memory_space<vmem>>, vector<16x72xbf16>
    %cst_6 = arith.constant dense<0.000000e+00> : vector<16x384xf32>
    %15 = tpu.matmul %14, %13, %cst_6 {dimension_numbers = #tpu.dot_dimension_numbers<[1], [0], [0], [1], [0, 0, 1, 1], [], []>} : vector<16x72xbf16>, vector<72x384xbf16>, vector<16x384xf32> -> vector<16x384xf32>
    %c0_7 = arith.constant 0 : index
    %c0_8 = arith.constant 0 : index
    %16 = vector.load %arg6[%c0_7, %c0_8] : memref<16x1xf32, #tpu.memory_space<vmem>>, vector<16x1xf32>
    %17 = vector.broadcast %16 : vector<16x1xf32> to vector<16x384xf32>
    %18 = arith.addf %15, %17 : vector<16x384xf32>
    %c0_9 = arith.constant 0 : index
    %c0_10 = arith.constant 0 : index
    %19 = vector.load %arg4[%c0_9, %c0_10] : memref<8x8xbf16, #tpu.memory_space<vmem>>, vector<8x8xbf16>
    %c0_11 = arith.constant 0 : index
    %c0_12 = arith.constant 0 : index
    %c0_13 = arith.constant 0 : index
    %20 = vector.load %arg2[%c0_11, %c0_12, %c0_13] : memref<1x8x384xbf16, #tpu.memory_space<vmem>>, vector<1x8x384xbf16>
    %21 = vector.shape_cast %20 : vector<1x8x384xbf16> to vector<8x384xbf16>
    %cst_14 = arith.constant dense<0.000000e+00> : vector<8x384xf32>
    %22 = tpu.matmul %19, %21, %cst_14 {dimension_numbers = #tpu.dot_dimension_numbers<[1], [0], [0], [1], [0, 0, 1, 1], [], []>} : vector<8x8xbf16>, vector<8x384xbf16>, vector<8x384xf32> -> vector<8x384xf32>
    %c0_15 = arith.constant 0 : index
    %c0_16 = arith.constant 0 : index
    %23 = vector.load %arg7[%c0_15, %c0_16] : memref<16x8xbf16, #tpu.memory_space<vmem>>, vector<16x8xbf16>
    %24 = arith.truncf %22 : vector<8x384xf32> to vector<8x384xbf16>
    %cst_17 = arith.constant dense<0.000000e+00> : vector<16x384xf32>
    %25 = tpu.matmul %23, %24, %cst_17 {dimension_numbers = #tpu.dot_dimension_numbers<[1], [0], [0], [1], [0, 0, 1, 1], [], []>} : vector<16x8xbf16>, vector<8x384xbf16>, vector<16x384xf32> -> vector<16x384xf32>
    %c0_18 = arith.constant 0 : index
    %c0_19 = arith.constant 0 : index
    %26 = vector.load %arg8[%c0_18, %c0_19] : memref<1x384xf32, #tpu.memory_space<vmem>>, vector<1x384xf32>
    %27 = vector.broadcast %26 : vector<1x384xf32> to vector<16x384xf32>
    %28 = arith.mulf %18, %27 : vector<16x384xf32>
    %cst_20 = arith.constant dense<0.000000e+00> : vector<16xf32>
    %29 = vector.multi_reduction <add>, %28, %cst_20 [1] : vector<16x384xf32> to vector<16xf32>
    %30 = vector.shape_cast %29 : vector<16xf32> to vector<16x1xf32>
    %cst_21 = arith.constant 3.906250e-03 : f32
    %31 = vector.broadcast %cst_21 : f32 to vector<16x1xf32>
    %32 = arith.mulf %30, %31 : vector<16x1xf32>
    %33 = vector.broadcast %26 : vector<1x384xf32> to vector<16x384xf32>
    %34 = arith.mulf %25, %33 : vector<16x384xf32>
    %cst_22 = arith.constant dense<0.000000e+00> : vector<16xf32>
    %35 = vector.multi_reduction <add>, %34, %cst_22 [1] : vector<16x384xf32> to vector<16xf32>
    %36 = vector.shape_cast %35 : vector<16xf32> to vector<16x1xf32>
    %cst_23 = arith.constant 3.906250e-03 : f32
    %37 = vector.broadcast %cst_23 : f32 to vector<16x1xf32>
    %38 = arith.mulf %36, %37 : vector<16x1xf32>
    %cst_24 = arith.constant dense<0xFF800000> : vector<1xf32>
    %39 = vector.multi_reduction <maximumf>, %32, %cst_24 [0] : vector<16x1xf32> to vector<1xf32>
    %40 = vector.shape_cast %39 : vector<1xf32> to vector<1x1xf32>
    %cst_25 = arith.constant dense<0xFF800000> : vector<1xf32>
    %41 = vector.multi_reduction <maximumf>, %38, %cst_25 [0] : vector<16x1xf32> to vector<1xf32>
    %42 = vector.shape_cast %41 : vector<1xf32> to vector<1x1xf32>
    %43 = arith.maximumf %40, %42 : vector<1x1xf32>
    %44 = vector.broadcast %43 : vector<1x1xf32> to vector<16x1xf32>
    %45 = arith.subf %32, %44 : vector<16x1xf32>
    %46 = math.exp %45 : vector<16x1xf32>
    %47 = vector.broadcast %43 : vector<1x1xf32> to vector<16x1xf32>
    %48 = arith.subf %38, %47 : vector<16x1xf32>
    %49 = math.exp %48 : vector<16x1xf32>
    %cst_26 = arith.constant dense<0.000000e+00> : vector<1xf32>
    %50 = vector.multi_reduction <add>, %46, %cst_26 [0] : vector<16x1xf32> to vector<1xf32>
    %51 = vector.shape_cast %50 : vector<1xf32> to vector<1x1xf32>
    %cst_27 = arith.constant dense<0.000000e+00> : vector<1xf32>
    %52 = vector.multi_reduction <add>, %49, %cst_27 [0] : vector<16x1xf32> to vector<1xf32>
    %53 = vector.shape_cast %52 : vector<1xf32> to vector<1x1xf32>
    %54 = arith.addf %51, %53 : vector<1x1xf32>
    %55 = tpu.reciprocal %54 {approx = true} : vector<1x1xf32> -> vector<1x1xf32>
    %56 = vector.broadcast %55 : vector<1x1xf32> to vector<16x1xf32>
    %57 = arith.mulf %46, %56 : vector<16x1xf32>
    %58 = vector.broadcast %55 : vector<1x1xf32> to vector<16x1xf32>
    %59 = arith.mulf %49, %58 : vector<16x1xf32>
    %60 = vector.broadcast %57 : vector<16x1xf32> to vector<16x384xf32>
    %61 = arith.mulf %18, %60 : vector<16x384xf32>
    %62 = vector.broadcast %59 : vector<16x1xf32> to vector<16x384xf32>
    %63 = arith.mulf %25, %62 : vector<16x384xf32>
    %64 = arith.addf %61, %63 : vector<16x384xf32>
    %c0_28 = arith.constant 0 : index
    %c0_29 = arith.constant 0 : index
    %c0_30 = arith.constant 0 : index
    %65 = vector.load %arg9[%c0_28, %c0_29, %c0_30] : memref<1x16x384xf32, #tpu.memory_space<vmem>>, vector<1x16x384xf32>
    %66 = vector.shape_cast %65 : vector<1x16x384xf32> to vector<16x384xf32>
    %67 = vector.shape_cast %64 : vector<16x384xf32> to vector<1x16x384xf32>
    tpu.vector_store %arg9[%c0_28, %c0_29, %c0_30], %67 {strides = array<i32>} : memref<1x16x384xf32, #tpu.memory_space<vmem>>, vector<1x16x384xf32>,
    return
  }
  func.func @transform_0(%arg0: i32) -> (i32, i32, i32) {
    %c0_i32 = arith.constant 0 : i32
    %c0_i32_0 = arith.constant 0 : i32
    %c0_i32_1 = arith.constant 0 : i32
    return %arg0, %c0_i32, %c0_i32_0 : i32, i32, i32
  }
  func.func @transform_1(%arg0: i32) -> (i32, i32, i32) {
    %c0_i32 = arith.constant 0 : i32
    %c0_i32_0 = arith.constant 0 : i32
    %c0_i32_1 = arith.constant 0 : i32
    return %arg0, %c0_i32, %c0_i32_0 : i32, i32, i32
  }
  func.func @transform_2(%arg0: i32) -> (i32, i32) {
    %c0_i32 = arith.constant 0 : i32
    %c0_i32_0 = arith.constant 0 : i32
    %c0_i32_1 = arith.constant 0 : i32
    return %c0_i32, %c0_i32_0 : i32, i32
  }
  func.func @transform_3(%arg0: i32) -> (i32, i32) {
    %c0_i32 = arith.constant 0 : i32
    %c0_i32_0 = arith.constant 0 : i32
    %c0_i32_1 = arith.constant 0 : i32
    return %c0_i32, %c0_i32_0 : i32, i32
  }
  func.func @transform_4(%arg0: i32) -> (i32, i32) {
    %c0_i32 = arith.constant 0 : i32
    %c0_i32_0 = arith.constant 0 : i32
    %c0_i32_1 = arith.constant 0 : i32
    return %c0_i32, %c0_i32_0 : i32, i32
  }
  func.func @transform_5(%arg0: i32) -> (i32, i32) {
    %c0_i32 = arith.constant 0 : i32
    %c0_i32_0 = arith.constant 0 : i32
    %c0_i32_1 = arith.constant 0 : i32
    return %c0_i32, %c0_i32_0 : i32, i32
  }
  func.func @transform_6(%arg0: i32) -> (i32, i32) {
    %c0_i32 = arith.constant 0 : i32
    %c0_i32_0 = arith.constant 0 : i32
    %c0_i32_1 = arith.constant 0 : i32
    return %c0_i32, %c0_i32_0 : i32, i32
  }
  func.func @transform_7(%arg0: i32) -> (i32, i32) {
    %c0_i32 = arith.constant 0 : i32
    %c0_i32_0 = arith.constant 0 : i32
    %c0_i32_1 = arith.constant 0 : i32
    return %c0_i32, %c0_i32_0 : i32, i32
  }
  func.func @transform_8(%arg0: i32) -> (i32, i32, i32) {
    %c0_i32 = arith.constant 0 : i32
    %c0_i32_0 = arith.constant 0 : i32
    %c0_i32_1 = arith.constant 0 : i32
    return %arg0, %c0_i32, %c0_i32_0 : i32, i32, i32
  }
}

</mosaic_0001>

<llo_original>
// kernel: tpu_custom_call.1
$region0: #{tpu_custom_call.1}
  #allocation0 [shape = 'u32[]', space=smem, size = 0x4, offset = 0x4, fixed_abs, tag = 'smem constant byte address 0x4 - core index']
  #allocation1 [shape = 'u32[144,128]{1,0:T(1,128)}', space=vmem, size = 0x12000, scoped, tag = 'internal scratch']
  %s0 = inlined_call_operand.vmem [shape: bf16[2,8,384], index: 0, kind: input, shape index: {}]
  %s1 = inlined_call_operand.hbm [shape: bf16[2,8,384], index: 1, kind: input, shape index: {}]
  %s2 = inlined_call_operand.hbm [shape: bf16[8,8], index: 2, kind: input, shape index: {}]
  %s3 = inlined_call_operand.vmem [shape: bf16[8,8], index: 3, kind: input, shape index: {}]
  %s4 = inlined_call_operand.vmem [shape: bf16[16,72], index: 4, kind: input, shape index: {}]
  %s5 = inlined_call_operand.vmem [shape: f32[16,1], index: 5, kind: input, shape index: {}]
  %s6 = inlined_call_operand.vmem [shape: bf16[16,8], index: 6, kind: input, shape index: {}]
  %s7 = inlined_call_operand.vmem [shape: f32[1,384], index: 7, kind: input, shape index: {}]
  %s8 = inlined_call_operand.hbm [shape: f32[2,16,384], index: 8, kind: output, shape index: {}]
  %s9 = sld [smem:[#allocation0]]
  $region73: #{tpu_custom_call.1} parent=0
    _
  %s11 = ssub.s32 1, %s9
  %s12 = scalar_select 0, %s11, %s9
  $region1: #{tpu_custom_call.1} parent=0
    #allocation2 [shape = 'u8[12288]{0}', space=vmem, size = 0x3000, scoped, tag = 'input window, operand 1']
    #allocation3 [shape = 's32[2]{0}', space=sflag, size = 0x8, scoped, tag = 'scoped memory for tpu_custom_call.1']
    #allocation4 [shape = 's32[2]{0}', space=sflag, size = 0x8, scoped, tag = 'scoped memory for tpu_custom_call.1']
    #allocation5 [shape = 'u8[2048]{0}', space=vmem, size = 0x800, scoped, tag = 'input window, operand 2, single buffered']
    #allocation6 [shape = 's32[1]{0}', space=sflag, size = 0x4, scoped, tag = 'scoped memory for tpu_custom_call.1']
    #allocation7 [shape = 'u8[49152]{0}', space=vmem, size = 0xc000, scoped, tag = 'output window, operand 0']
    %13 = vsyncpa [#allocation3], 0
    %s14 = scalar_lea.sflag [#allocation3], 1
    %15 = vsyncpa %s14, 0
    %16 = vsyncpa [#allocation6], 0
    %17 = vsyncpa [#allocation4], 0
    %s18 = scalar_lea.sflag [#allocation4], 1
    %19 = vsyncpa %s18, 0
    loop: start=0, step=1, limit=4
    $region2: #{tpu_custom_call.1} parent=1 // loop_pre_header
      _
    $region3: #{tpu_custom_call.1} parent=1 // loop_header
      %s21 = sphi 0, %s25
      %p22 = scmp.ge.s32.totalorder %s21, 4
      %s31 = sphi 0, %s33
      %s34 = sphi 0, %s31
      %s35 = sphi 0, %s34
      %s51 = sphi 0, %s35
      %s57 = sphi 0, %s59
      %s60 = sphi 0, %s57
      %s61 = sphi 0, %s60
      %s77 = sphi 0, %s61
      %s81 = sphi 0, %s81
      %s83 = sphi 0, %s81
      %s84 = sphi 0, %s83
      %s98 = sphi 0, %s84
      %s102 = sphi 0, %s102
      %s104 = sphi 0, %s102
      %s105 = sphi 0, %s104
      %s119 = sphi 0, %s105
      %s123 = sphi 0, %s123
      %s125 = sphi 0, %s123
      %s126 = sphi 0, %s125
      %s140 = sphi 0, %s126
      %s144 = sphi 0, %s144
      %s146 = sphi 0, %s144
      %s147 = sphi 0, %s146
      %s161 = sphi 0, %s147
      %s165 = sphi 0, %s165
      %s167 = sphi 0, %s165
      %s168 = sphi 0, %s167
      %s182 = sphi 0, %s168
      %s186 = sphi 0, %s186
      %s188 = sphi 0, %s186
      %s189 = sphi 0, %s188
      %s203 = sphi 0, %s189
      %s209 = sphi 0, %s211
      %s212 = sphi 0, %s209
      %s213 = sphi 0, %s212
      %s229 = sphi 0, %s213
    $region4: #{tpu_custom_call.1} parent=1 // loop_header_branch
      %24 = sbr.rel (%p22) target = $region8
    $region5: #{tpu_custom_call.1} parent=1 // loop_body
      %s26 = ssub.s32 %s21, 1
      %s27 = ssub.s32 %s21, 2
      %s28 = sadd.s32 %s21, 1
      %s29 = ssub.s32 %s21, %s28
      %p30 = scmp.eq.s32.totalorder %s29, 0
      %s32 = sadd.s32 %s31, 1
      %s33 = scalar_select %p30, %s31, %s32
      %p36 = pneg %p30
      %p37 = scmp.eq.s32.totalorder %s21, 1
      %p38 = por %p36, %p37
      %p39 = scmp.ne.s32.totalorder %s31, %s34
      %p40 = scmp.eq.s32.totalorder %s21, 0
      %p41 = por %p39, %p40
      %p42 = scmp.ne.s32.totalorder %s31, %s34
      %p43 = scmp.eq.s32.totalorder %s26, 1
      %p44 = por %p42, %p43
      %p45 = scmp.ne.s32.totalorder %s34, %s35
      %p46 = scmp.eq.s32.totalorder %s26, 0
      %p47 = por %p45, %p46
      %p48 = scmp.ne.s32.totalorder %s34, %s35
      %p49 = scmp.eq.s32.totalorder %s27, 1
      %p50 = por %p48, %p49
      %p52 = scmp.ne.s32.totalorder %s35, %s51
      %p53 = scmp.eq.s32.totalorder %s27, 0
      %p54 = por %p52, %p53
      %s55 = ssub.s32 %s21, %s28
      %p56 = scmp.eq.s32.totalorder %s55, 0
      %s58 = sadd.s32 %s57, 1
      %s59 = scalar_select %p56, %s57, %s58
      %p62 = pneg %p56
      %p63 = scmp.eq.s32.totalorder %s21, 1
      %p64 = por %p62, %p63
      %p65 = scmp.ne.s32.totalorder %s57, %s60
      %p66 = scmp.eq.s32.totalorder %s21, 0
      %p67 = por %p65, %p66
      %p68 = scmp.ne.s32.totalorder %s57, %s60
      %p69 = scmp.eq.s32.totalorder %s26, 1
      %p70 = por %p68, %p69
      %p71 = scmp.ne.s32.totalorder %s60, %s61
      %p72 = scmp.eq.s32.totalorder %s26, 0
      %p73 = por %p71, %p72
      %p74 = scmp.ne.s32.totalorder %s60, %s61
      %p75 = scmp.eq.s32.totalorder %s27, 1
      %p76 = por %p74, %p75
      %p78 = scmp.ne.s32.totalorder %s61, %s77
      %p79 = scmp.eq.s32.totalorder %s27, 0
      %p80 = por %p78, %p79
      %s82 = sadd.s32 %s81, 1
      %p85 = scmp.eq.s32.totalorder %s21, 1
      %p86 = scmp.ne.s32.totalorder %s81, %s83
      %p87 = scmp.eq.s32.totalorder %s21, 0
      %p88 = por %p86, %p87
      %p89 = scmp.ne.s32.totalorder %s81, %s83
      %p90 = scmp.eq.s32.totalorder %s26, 1
      %p91 = por %p89, %p90
      %p92 = scmp.ne.s32.totalorder %s83, %s84
      %p93 = scmp.eq.s32.totalorder %s26, 0
      %p94 = por %p92, %p93
      %p95 = scmp.ne.s32.totalorder %s83, %s84
      %p96 = scmp.eq.s32.totalorder %s27, 1
      %p97 = por %p95, %p96
      %p99 = scmp.ne.s32.totalorder %s84, %s98
      %p100 = scmp.eq.s32.totalorder %s27, 0
      %p101 = por %p99, %p100
      %s103 = sadd.s32 %s102, 1
      %p106 = scmp.eq.s32.totalorder %s21, 1
      %p107 = scmp.ne.s32.totalorder %s102, %s104
      %p108 = scmp.eq.s32.totalorder %s21, 0
      %p109 = por %p107, %p108
      %p110 = scmp.ne.s32.totalorder %s102, %s104
      %p111 = scmp.eq.s32.totalorder %s26, 1
      %p112 = por %p110, %p111
      %p113 = scmp.ne.s32.totalorder %s104, %s105
      %p114 = scmp.eq.s32.totalorder %s26, 0
      %p115 = por %p113, %p114
      %p116 = scmp.ne.s32.totalorder %s104, %s105
      %p117 = scmp.eq.s32.totalorder %s27, 1
      %p118 = por %p116, %p117
      %p120 = scmp.ne.s32.totalorder %s105, %s119
      %p121 = scmp.eq.s32.totalorder %s27, 0
      %p122 = por %p120, %p121
      %s124 = sadd.s32 %s123, 1
      %p127 = scmp.eq.s32.totalorder %s21, 1
      %p128 = scmp.ne.s32.totalorder %s123, %s125
      %p129 = scmp.eq.s32.totalorder %s21, 0
      %p130 = por %p128, %p129
      %p131 = scmp.ne.s32.totalorder %s123, %s125
      %p132 = scmp.eq.s32.totalorder %s26, 1
      %p133 = por %p131, %p132
      %p134 = scmp.ne.s32.totalorder %s125, %s126
      %p135 = scmp.eq.s32.totalorder %s26, 0
      %p136 = por %p134, %p135
      %p137 = scmp.ne.s32.totalorder %s125, %s126
      %p138 = scmp.eq.s32.totalorder %s27, 1
      %p139 = por %p137, %p138
      %p141 = scmp.ne.s32.totalorder %s126, %s140
      %p142 = scmp.eq.s32.totalorder %s27, 0
      %p143 = por %p141, %p142
      %s145 = sadd.s32 %s144, 1
      %p148 = scmp.eq.s32.totalorder %s21, 1
      %p149 = scmp.ne.s32.totalorder %s144, %s146
      %p150 = scmp.eq.s32.totalorder %s21, 0
      %p151 = por %p149, %p150
      %p152 = scmp.ne.s32.totalorder %s144, %s146
      %p153 = scmp.eq.s32.totalorder %s26, 1
      %p154 = por %p152, %p153
      %p155 = scmp.ne.s32.totalorder %s146, %s147
      %p156 = scmp.eq.s32.totalorder %s26, 0
      %p157 = por %p155, %p156
      %p158 = scmp.ne.s32.totalorder %s146, %s147
      %p159 = scmp.eq.s32.totalorder %s27, 1
      %p160 = por %p158, %p159
      %p162 = scmp.ne.s32.totalorder %s147, %s161
      %p163 = scmp.eq.s32.totalorder %s27, 0
      %p164 = por %p162, %p163
      %s166 = sadd.s32 %s165, 1
      %p169 = scmp.eq.s32.totalorder %s21, 1
      %p170 = scmp.ne.s32.totalorder %s165, %s167
      %p171 = scmp.eq.s32.totalorder %s21, 0
      %p172 = por %p170, %p171
      %p173 = scmp.ne.s32.totalorder %s165, %s167
      %p174 = scmp.eq.s32.totalorder %s26, 1
      %p175 = por %p173, %p174
      %p176 = scmp.ne.s32.totalorder %s167, %s168
      %p177 = scmp.eq.s32.totalorder %s26, 0
      %p178 = por %p176, %p177
      %p179 = scmp.ne.s32.totalorder %s167, %s168
      %p180 = scmp.eq.s32.totalorder %s27, 1
      %p181 = por %p179, %p180
      %p183 = scmp.ne.s32.totalorder %s168, %s182
      %p184 = scmp.eq.s32.totalorder %s27, 0
      %p185 = por %p183, %p184
      %s187 = sadd.s32 %s186, 1
      %p190 = scmp.eq.s32.totalorder %s21, 1
      %p191 = scmp.ne.s32.totalorder %s186, %s188
      %p192 = scmp.eq.s32.totalorder %s21, 0
      %p193 = por %p191, %p192
      %p194 = scmp.ne.s32.totalorder %s186, %s188
      %p195 = scmp.eq.s32.totalorder %s26, 1
      %p196 = por %p194, %p195
      %p197 = scmp.ne.s32.totalorder %s188, %s189
      %p198 = scmp.eq.s32.totalorder %s26, 0
      %p199 = por %p197, %p198
      %p200 = scmp.ne.s32.totalorder %s188, %s189
      %p201 = scmp.eq.s32.totalorder %s27, 1
      %p202 = por %p200, %p201
      %p204 = scmp.ne.s32.totalorder %s189, %s203
      %p205 = scmp.eq.s32.totalorder %s27, 0
      %p206 = por %p204, %p205
      %s207 = ssub.s32 %s21, %s28
      %p208 = scmp.eq.s32.totalorder %s207, 0
      %s210 = sadd.s32 %s209, 1
      %s211 = scalar_select %p208, %s209, %s210
      %p214 = pneg %p208
      %p215 = scmp.eq.s32.totalorder %s21, 1
      %p216 = por %p214, %p215
      %p217 = scmp.ne.s32.totalorder %s209, %s212
      %p218 = scmp.eq.s32.totalorder %s21, 0
      %p219 = por %p217, %p218
      %p220 = scmp.ne.s32.totalorder %s209, %s212
      %p221 = scmp.eq.s32.totalorder %s26, 1
      %p222 = por %p220, %p221
      %p223 = scmp.ne.s32.totalorder %s212, %s213
      %p224 = scmp.eq.s32.totalorder %s26, 0
      %p225 = por %p223, %p224
      %p226 = scmp.ne.s32.totalorder %s212, %s213
      %p227 = scmp.eq.s32.totalorder %s27, 1
      %p228 = por %p226, %p227
      %p230 = scmp.ne.s32.totalorder %s213, %s229
      %p231 = scmp.eq.s32.totalorder %s27, 0
      %p232 = por %p230, %p231
      %p233 = scmp.le.s32.totalorder 1, %s21
      %p234 = scmp.lt.s32.totalorder %s21, 3
      %p235 = pnand %p233, %p234
      %p236 = pneg %p235
      // Predicated region
      $region9: #{tpu_custom_call.1} parent=5 // pred_check
        _
      $region10: #{tpu_custom_call.1} parent=5 // pred_check_branch
        %238 = sbr.rel (%p235) target = $region12
      $region11: #{tpu_custom_call.1} parent=5 // pred_region
        %s239 = ssub.s32 %s21, 1
        // Predicated region
        $region13: #{tpu_custom_call.1} parent=11 // pred_check
          %p240 = pneg %p94
        $region14: #{tpu_custom_call.1} parent=11 // pred_check_branch
          %242 = sbr.rel (%p240) target = $region16
        $region15: #{tpu_custom_call.1} parent=11 // pred_region
          %s244 = ssub.s32 64, 64
          %245 = vsyncadd [#allocation6], %s244
          %s247 = sshll.u32 [#allocation5], 4
          %s248 = int_to_ptr.vmem [resolvable:$true] %s247
          %250 = dma.hbm_to_vmem [thread:$0]  %s2, 64, %s248, [#allocation6]
        $region16: #{tpu_custom_call.1} parent=11 // pred_fallthru
          _
        // Predicated region
        $region17: #{tpu_custom_call.1} parent=11 // pred_check
          %p251 = pneg %p115
        $region18: #{tpu_custom_call.1} parent=11 // pred_check_branch
          %253 = sbr.rel (%p251) target = $region20
        $region19: #{tpu_custom_call.1} parent=11 // pred_region
          _
        $region20: #{tpu_custom_call.1} parent=11 // pred_fallthru
          _
        // Predicated region
        $region21: #{tpu_custom_call.1} parent=11 // pred_check
          %p254 = pneg %p136
        $region22: #{tpu_custom_call.1} parent=11 // pred_check_branch
          %256 = sbr.rel (%p254) target = $region24
        $region23: #{tpu_custom_call.1} parent=11 // pred_region
          _
        $region24: #{tpu_custom_call.1} parent=11 // pred_fallthru
          _
        // Predicated region
        $region25: #{tpu_custom_call.1} parent=11 // pred_check
          %p257 = pneg %p157
        $region26: #{tpu_custom_call.1} parent=11 // pred_check_branch
          %259 = sbr.rel (%p257) target = $region28
        $region27: #{tpu_custom_call.1} parent=11 // pred_region
          _
        $region28: #{tpu_custom_call.1} parent=11 // pred_fallthru
          _
        // Predicated region
        $region29: #{tpu_custom_call.1} parent=11 // pred_check
          %p260 = pneg %p178
        $region30: #{tpu_custom_call.1} parent=11 // pred_check_branch
          %262 = sbr.rel (%p260) target = $region32
        $region31: #{tpu_custom_call.1} parent=11 // pred_region
          _
        $region32: #{tpu_custom_call.1} parent=11 // pred_fallthru
          _
        // Predicated region
        $region33: #{tpu_custom_call.1} parent=11 // pred_check
          %p263 = pneg %p199
        $region34: #{tpu_custom_call.1} parent=11 // pred_check_branch
          %265 = sbr.rel (%p263) target = $region36
        $region35: #{tpu_custom_call.1} parent=11 // pred_region
          _
        $region36: #{tpu_custom_call.1} parent=11 // pred_fallthru
          _
      $region12: #{tpu_custom_call.1} parent=5 // pred_fallthru
        _
      %p266 = scmp.lt.s32.totalorder %s21, 2
      // Predicated region
      $region37: #{tpu_custom_call.1} parent=5 // pred_check
        %p267 = pneg %p266
      $region38: #{tpu_custom_call.1} parent=5 // pred_check_branch
        %269 = sbr.rel (%p267) target = $region40
      $region39: #{tpu_custom_call.1} parent=5 // pred_region
        // Predicated region
        $region41: #{tpu_custom_call.1} parent=39 // pred_check
          %p270 = pneg %p41
        $region42: #{tpu_custom_call.1} parent=39 // pred_check_branch
          %272 = sbr.rel (%p270) target = $region44
        $region43: #{tpu_custom_call.1} parent=39 // pred_region
          %p273 = scmp.lt.s32.totalorder %s21, 1
          %s274 = scalar_select %p273, %s21, 1
          %s275 = smul.addr %s274, 3
          %s276 = smul.addr %s275, 4
          %s277 = scalar_lea.vmem %s0, %s276
        $region44: #{tpu_custom_call.1} parent=39 // pred_fallthru
          _
        // Predicated region
        $region45: #{tpu_custom_call.1} parent=39 // pred_check
          %p278 = pneg %p67
        $region46: #{tpu_custom_call.1} parent=39 // pred_check_branch
          %280 = sbr.rel (%p278) target = $region48
        $region47: #{tpu_custom_call.1} parent=39 // pred_region
          %s281 = sand.u32 %s57, 1
          %s282 = scalar_lea.sflag [#allocation3], %s281
          %s283 = sand.u32 %s57, 1
          %s284 = smul.addr %s283, 12
          %s285 = scalar_lea.vmem [#allocation2], %s284
          %s287 = ssub.s32 192, 192
          %288 = vsyncadd %s282, %s287
          %s289 = smul.addr %s21, 3
          %s290 = smul.addr %s289, 64
          %s291 = scalar_lea.hbm %s1, %s290
          %s293 = sshll.u32 %s285, 4
          %s294 = int_to_ptr.vmem [resolvable:$true] %s293
          %296 = dma.hbm_to_vmem [thread:$0]  %s291, 192, %s294, %s282
        $region48: #{tpu_custom_call.1} parent=39 // pred_fallthru
          _
      $region40: #{tpu_custom_call.1} parent=5 // pred_fallthru
        _
      %p297 = scmp.le.s32.totalorder 1, %s21
      %p298 = scmp.lt.s32.totalorder %s21, 3
      %p299 = pnand %p297, %p298
      %p300 = pneg %p299
      // Predicated region
      $region49: #{tpu_custom_call.1} parent=5 // pred_check
        _
      $region50: #{tpu_custom_call.1} parent=5 // pred_check_branch
        %302 = sbr.rel (%p299) target = $region52
      $region51: #{tpu_custom_call.1} parent=5 // pred_region
        %s303 = ssub.s32 %s21, 1
        %s304 = sand.u32 %s60, 1
        %s305 = scalar_lea.sflag [#allocation3], %s304
        %s306 = sand.u32 %s60, 1
        %s307 = smul.addr %s306, 12
        %s308 = scalar_lea.vmem [#allocation2], %s307
        // Predicated region
        $region53: #{tpu_custom_call.1} parent=51 // pred_check
          %p309 = pneg %p73
        $region54: #{tpu_custom_call.1} parent=51 // pred_check_branch
          %311 = sbr.rel (%p309) target = $region56
        $region55: #{tpu_custom_call.1} parent=51 // pred_region
          %312 = dma.done %s305, 192
        $region56: #{tpu_custom_call.1} parent=51 // pred_fallthru
          _
        // Predicated region
        $region57: #{tpu_custom_call.1} parent=51 // pred_check
          %p313 = pneg %p94
        $region58: #{tpu_custom_call.1} parent=51 // pred_check_branch
          %315 = sbr.rel (%p313) target = $region60
        $region59: #{tpu_custom_call.1} parent=51 // pred_region
          %316 = dma.done [#allocation6], 64
        $region60: #{tpu_custom_call.1} parent=51 // pred_fallthru
          _
        %p317 = scmp.lt.s32.totalorder %s26, 1
        %s318 = scalar_select %p317, %s26, 1
        %s319 = smul.addr %s318, 3
        %s320 = smul.addr %s319, 4
        %s321 = scalar_lea.vmem %s0, %s320
        %p322 = pneg %p47
        %p323 = pneg %p44
        %s324 = sand.u32 %s60, 1
        %s325 = scalar_lea.sflag [#allocation3], %s324
        %s326 = sand.u32 %s60, 1
        %s327 = smul.addr %s326, 12
        %s328 = scalar_lea.vmem [#allocation2], %s327
        %p329 = pneg %p73
        %p330 = pneg %p70
        %p331 = pneg %p94
        %p332 = pneg %p91
        %p333 = pneg %p115
        %p334 = pneg %p112
        %p335 = pneg %p136
        %p336 = pneg %p133
        %p337 = pneg %p157
        %p338 = pneg %p154
        %p339 = pneg %p178
        %p340 = pneg %p175
        %p341 = pneg %p199
        %p342 = pneg %p196
        %p343 = pneg %p225
        %p344 = pneg %p222
        %s345 = sand.u32 %s212, 1
        %s346 = scalar_lea.sflag [#allocation4], %s345
        %s347 = sand.u32 %s212, 1
        %s348 = smul.addr %s347, 48
        %s349 = scalar_lea.vmem [#allocation7], %s348
        %p350 = scmp.lt.s32.totalorder %s26, 1
        %s351 = scalar_select %p350, %s26, 1
        %s352 = smul.addr %s351, 3
        %s353 = smul.addr %s352, 4
        %s354 = scalar_lea.vmem %s0, %s353
        %v356 = vld [vmem:[#allocation5] sm:$0xf]
        %v357 = vld [vmem:[%s354] sm:$0xff]
        %v358 = vld [vmem:[%s354 + $0x8] sm:$0xf]
        %v361 = vunpack.c.l.b16 %v357
        %v362 = vunpack.c.h.b16 %v357
        %v363 = vunpack.c.l.b16 %v358
        %v364 = vpack.c.b16 %v361, %v361
        %v365 = vpack.c.b16 %v362, %v362
        %v366 = vpack.c.b16 %v363, %v363
        %vm367 = vcmask 64512
        %v369 = vsel %vm367, %v356, 0
        %vm371 = vcmask 1043456
        %v373 = vsel %vm371, %v364, 0
        %v376 = vsel %vm371, %v365, 0
        %v379 = vsel %vm371, %v366, 0
        %381 = vmatprep.subr.bf16.mxu0 %v376
        %382 = vmatpush1.bf16.msra.mxu0 %v373
        %383 = vmatprep.subr.bf16.mxu0 0
        %384 = vmatpush1.bf16.msra.mxu0 0
        %385 = vmatprep.subr.bf16.mxu0 0
        %386 = vmatpush1.bf16.msra.mxu0 0
        %387 = vmatprep.subr.bf16.mxu0 0
        %388 = vmatpush1.bf16.msra.mxu0 0
        %389 = vmatprep.subr.bf16.mxu0 0
        %390 = vmatpush1.bf16.msra.mxu0 0
        %391 = vmatprep.subr.bf16.mxu0 0
        %392 = vmatpush1.bf16.msra.mxu0 0
        %393 = vmatprep.subr.bf16.mxu0 0
        %394 = vmatpush1.bf16.msra.mxu0 0
        %395 = vmatprep.subr.bf16.mxu0 0
        %396 = vmatpush1.bf16.msra.mxu0 0
        %397 = vmatprep.subr.bf16.mxu0 0
        %398 = vmatpush1.bf16.msra.mxu0 0
        %399 = vmatprep.subr.bf16.mxu0 0
        %400 = vmatpush1.bf16.msra.mxu0 0
        %401 = vmatprep.subr.bf16.mxu0 0
        %402 = vmatpush1.bf16.msra.mxu0 0
        %403 = vmatprep.subr.bf16.mxu0 0
        %404 = vmatpush1.bf16.msra.mxu0 0
        %405 = vmatprep.subr.bf16.mxu0 0
        %406 = vmatpush1.bf16.msra.mxu0 0
        %407 = vmatprep.subr.bf16.mxu0 0
        %408 = vmatpush1.bf16.msra.mxu0 0
        %409 = vmatprep.subr.bf16.mxu0 0
        %410 = vmatpush1.bf16.msra.mxu0 0
        %411 = vmatprep.subr.bf16.mxu0 0
        %412 = vmatpush1.bf16.msra.mxu0 0
        %413 = vmatprep.mubr.bf16.mxu0 0
        %414 = vmatmul.mubr.bf16.gmra.mrb[0].mxu0 %v369
        %v415 = vpop.f32.mrb[0].mxu0
        %v416 = vadd.f32 0.0, %v415
        %v417 = vpop.f32.mrb[0].mxu0
        %v418 = vadd.f32 0.0, %v417
        %v419 = vpop.f32.mrb[0].mxu0
        %v420 = vpop.f32.mrb[0].mxu0
        %421 = vdwg.mxu0
        %422 = vmatprep.subr.bf16.mxu0 0
        %423 = vmatpush1.bf16.msra.mxu0 %v379
        %424 = vmatprep.subr.bf16.mxu0 0
        %425 = vmatpush1.bf16.msra.mxu0 0
        %426 = vmatprep.subr.bf16.mxu0 0
        %427 = vmatpush1.bf16.msra.mxu0 0
        %428 = vmatprep.subr.bf16.mxu0 0
        %429 = vmatpush1.bf16.msra.mxu0 0
        %430 = vmatprep.subr.bf16.mxu0 0
        %431 = vmatpush1.bf16.msra.mxu0 0
        %432 = vmatprep.subr.bf16.mxu0 0
        %433 = vmatpush1.bf16.msra.mxu0 0
        %434 = vmatprep.subr.bf16.mxu0 0
        %435 = vmatpush1.bf16.msra.mxu0 0
        %436 = vmatprep.subr.bf16.mxu0 0
        %437 = vmatpush1.bf16.msra.mxu0 0
        %438 = vmatprep.subr.bf16.mxu0 0
        %439 = vmatpush1.bf16.msra.mxu0 0
        %440 = vmatprep.subr.bf16.mxu0 0
        %441 = vmatpush1.bf16.msra.mxu0 0
        %442 = vmatprep.subr.bf16.mxu0 0
        %443 = vmatpush1.bf16.msra.mxu0 0
        %444 = vmatprep.subr.bf16.mxu0 0
        %445 = vmatpush1.bf16.msra.mxu0 0
        %446 = vmatprep.subr.bf16.mxu0 0
        %447 = vmatpush1.bf16.msra.mxu0 0
        %448 = vmatprep.subr.bf16.mxu0 0
        %449 = vmatpush1.bf16.msra.mxu0 0
        %450 = vmatprep.subr.bf16.mxu0 0
        %451 = vmatpush1.bf16.msra.mxu0 0
        %452 = vmatprep.subr.bf16.mxu0 0
        %453 = vmatpush1.bf16.msra.mxu0 0
        %454 = vmatprep.mubr.bf16.mxu0 0
        %455 = vmatmul.mubr.bf16.gmra.mrb[0].mxu0 %v369
        %v456 = vpop.f32.mrb[0].mxu0
        %v457 = vadd.f32 0.0, %v456
        %v458 = vpop.f32.mrb[0].mxu0
        %v459 = vpop.f32.mrb[0].mxu0
        %v460 = vpop.f32.mrb[0].mxu0
        %461 = vdwg.mxu0
        %462 = vrot.lane.b32.xlu0 %v416, 19
        %v463 = vpop.permute.xlu0 %462
        %464 = vrot.lane.b32.xlu0 %v418, 19
        %v465 = vpop.permute.xlu0 %464
        %466 = vrot.lane.b32.xlu0 %v457, 19
        %v467 = vpop.permute.xlu0 %466
        %v468 = vlaneseq
        %v469 = vand.u32 %v468, 127
        %vm470 = vcmp.lt.s32.totalorder %v469, 19
        %v471 = vsel %vm470, %v465, %v467
        %v472 = vsel %vm470, %v463, %v465
        %v473 = vsel %vm470, %v467, %v463
        %474 = vrot.lane.b32.xlu0 %v416, 18
        %v475 = vpop.permute.xlu0 %474
        %476 = vrot.lane.b32.xlu0 %v418, 18
        %v477 = vpop.permute.xlu0 %476
        %478 = vrot.lane.b32.xlu0 %v457, 18
        %v479 = vpop.permute.xlu0 %478
        %vm480 = vcmp.lt.s32.totalorder %v469, 18
        %v481 = vsel %vm480, %v477, %v479
        %v482 = vsel %vm480, %v475, %v477
        %v483 = vsel %vm480, %v479, %v475
        %484 = vrot.lane.b32.xlu0 %v416, 17
        %v485 = vpop.permute.xlu0 %484
        %486 = vrot.lane.b32.xlu0 %v418, 17
        %v487 = vpop.permute.xlu0 %486
        %488 = vrot.lane.b32.xlu0 %v457, 17
        %v489 = vpop.permute.xlu0 %488
        %vm490 = vcmp.lt.s32.totalorder %v469, 17
        %v491 = vsel %vm490, %v487, %v489
        %v492 = vsel %vm490, %v485, %v487
        %v493 = vsel %vm490, %v489, %v485
        %494 = vrot.lane.b32.xlu0 %v416, 1
        %v495 = vpop.permute.xlu0 %494
        %496 = vrot.lane.b32.xlu0 %v418, 1
        %v497 = vpop.permute.xlu0 %496
        %498 = vrot.lane.b32.xlu0 %v457, 1
        %v499 = vpop.permute.xlu0 %498
        %vm500 = vcmp.lt.s32.totalorder %v469, 1
        %v501 = vsel %vm500, %v497, %v499
        %v502 = vsel %vm500, %v495, %v497
        %v503 = vsel %vm500, %v499, %v495
        %504 = vrot.lane.b32.xlu0 %v416, 127
        %v505 = vpop.permute.xlu0 %504
        %506 = vrot.lane.b32.xlu0 %v418, 127
        %v507 = vpop.permute.xlu0 %506
        %508 = vrot.lane.b32.xlu0 %v457, 127
        %v509 = vpop.permute.xlu0 %508
        %vm510 = vcmp.lt.s32.totalorder %v469, 127
        %v511 = vsel %vm510, %v507, %v509
        %v512 = vsel %vm510, %v505, %v507
        %v513 = vsel %vm510, %v509, %v505
        %514 = vrot.lane.b32.xlu0 %v416, 111
        %v515 = vpop.permute.xlu0 %514
        %516 = vrot.lane.b32.xlu0 %v418, 111
        %v517 = vpop.permute.xlu0 %516
        %518 = vrot.lane.b32.xlu0 %v457, 111
        %v519 = vpop.permute.xlu0 %518
        %vm520 = vcmp.lt.s32.totalorder %v469, 111
        %v521 = vsel %vm520, %v517, %v519
        %v522 = vsel %vm520, %v515, %v517
        %v523 = vsel %vm520, %v519, %v515
        %524 = vrot.lane.b32.xlu0 %v416, 110
        %v525 = vpop.permute.xlu0 %524
        %526 = vrot.lane.b32.xlu0 %v418, 110
        %v527 = vpop.permute.xlu0 %526
        %528 = vrot.lane.b32.xlu0 %v457, 110
        %v529 = vpop.permute.xlu0 %528
        %vm530 = vcmp.lt.s32.totalorder %v469, 110
        %v531 = vsel %vm530, %v527, %v529
        %v532 = vsel %vm530, %v525, %v527
        %v533 = vsel %vm530, %v529, %v525
        %534 = vrot.lane.b32.xlu0 %v416, 109
        %v535 = vpop.permute.xlu0 %534
        %536 = vrot.lane.b32.xlu0 %v418, 109
        %v537 = vpop.permute.xlu0 %536
        %538 = vrot.lane.b32.xlu0 %v457, 109
        %v539 = vpop.permute.xlu0 %538
        %vm540 = vcmp.lt.s32.totalorder %v469, 109
        %v541 = vsel %vm540, %v537, %v539
        %v542 = vsel %vm540, %v535, %v537
        %v543 = vsel %vm540, %v539, %v535
        %v544 = vpack.c.bf16 %v483, %v473
        %v545 = vpack.c.bf16 %v482, %v472
        %v546 = vpack.c.bf16 %v481, %v471
        %v547 = vpack.c.bf16 %v503, %v493
        %v548 = vpack.c.bf16 %v502, %v492
        %v549 = vpack.c.bf16 %v501, %v491
        %v550 = vpack.c.bf16 %v512, %v416
        %v551 = vpack.c.bf16 %v511, %v418
        %v552 = vpack.c.bf16 %v513, %v457
        %v553 = vpack.c.bf16 %v532, %v522
        %v554 = vpack.c.bf16 %v531, %v521
        %v555 = vpack.c.bf16 %v533, %v523
        %v556 = vpack.c.bf16 %v542, %v542
        %v557 = vpack.c.bf16 %v541, %v541
        %v558 = vpack.c.bf16 %v543, %v543
        %v559 = vld [vmem:[%s4] sm:$0xf]
        %v560 = vld [vmem:[%s4 + $0x4] sm:$0xf]
        %v561 = vld [vmem:[%s5] sm:$0xff]
        %v562 = vld [vmem:[%s5 + $0x8] sm:$0xff]
        %564 = vset.pattern.permute.xlu0 0
        %565 = vperm.xlu0 %564, %v561
        %v566 = vpop.permute.xlu0 %565
        %569 = vset.pattern.permute.xlu0 0
        %570 = vperm.xlu0 %569, %v562
        %v571 = vpop.permute.xlu0 %570
        %v575 = vunpack.c.l.b16 %v559
        %v576 = vunpack.c.l.b16 %v560
        %v577 = vpack.c.b16 %v576, %v575
        %vm578 = vcmask 588800
        %v580 = vsel %vm578, %v577, 0
        %v583 = vsel %vm371, %v556, 0
        %v586 = vsel %vm371, %v557, 0
        %v589 = vsel %vm371, %v558, 0
        %591 = vmatprep.subr.bf16.mxu0 %v545
        %592 = vmatpush1.bf16.msra.mxu0 %v544
        %593 = vmatprep.subr.bf16.mxu0 %v548
        %594 = vmatpush1.bf16.msra.mxu0 %v547
        %595 = vmatprep.subr.bf16.mxu0 %v551
        %596 = vmatpush1.bf16.msra.mxu0 %v550
        %597 = vmatprep.subr.bf16.mxu0 %v554
        %598 = vmatpush1.bf16.msra.mxu0 %v553
        %599 = vmatprep.subr.bf16.mxu0 %v586
        %600 = vmatpush1.bf16.msra.mxu0 %v583
        %601 = vmatprep.subr.bf16.mxu0 0
        %602 = vmatpush1.bf16.msra.mxu0 0
        %603 = vmatprep.subr.bf16.mxu0 0
        %604 = vmatpush1.bf16.msra.mxu0 0
        %605 = vmatprep.subr.bf16.mxu0 0
        %606 = vmatpush1.bf16.msra.mxu0 0
        %607 = vmatprep.subr.bf16.mxu0 0
        %608 = vmatpush1.bf16.msra.mxu0 0
        %609 = vmatprep.subr.bf16.mxu0 0
        %610 = vmatpush1.bf16.msra.mxu0 0
        %611 = vmatprep.subr.bf16.mxu0 0
        %612 = vmatpush1.bf16.msra.mxu0 0
        %613 = vmatprep.subr.bf16.mxu0 0
        %614 = vmatpush1.bf16.msra.mxu0 0
        %615 = vmatprep.subr.bf16.mxu0 0
        %616 = vmatpush1.bf16.msra.mxu0 0
        %617 = vmatprep.subr.bf16.mxu0 0
        %618 = vmatpush1.bf16.msra.mxu0 0
        %619 = vmatprep.subr.bf16.mxu0 0
        %620 = vmatpush1.bf16.msra.mxu0 0
        %621 = vmatprep.subr.bf16.mxu0 0
        %622 = vmatpush1.bf16.msra.mxu0 0
        %623 = vmatprep.mubr.bf16.mxu0 0
        %624 = vmatmul.mubr.bf16.gmra.mrb[0].mxu0 %v580
        %v625 = vpop.f32.mrb[0].mxu0
        %v626 = vadd.f32 %v566, %v625
        %v627 = vpop.f32.mrb[0].mxu0
        %v628 = vadd.f32 %v566, %v627
        %v629 = vpop.f32.mrb[0].mxu0
        %v630 = vadd.f32 %v571, %v629
        %v631 = vpop.f32.mrb[0].mxu0
        %v632 = vadd.f32 %v571, %v631
        %633 = vdwg.mxu0
        %634 = vmatprep.subr.bf16.mxu0 0
        %635 = vmatpush1.bf16.msra.mxu0 %v546
        %636 = vmatprep.subr.bf16.mxu0 0
        %637 = vmatpush1.bf16.msra.mxu0 %v549
        %638 = vmatprep.subr.bf16.mxu0 0
        %639 = vmatpush1.bf16.msra.mxu0 %v552
        %640 = vmatprep.subr.bf16.mxu0 0
        %641 = vmatpush1.bf16.msra.mxu0 %v555
        %642 = vmatprep.subr.bf16.mxu0 0
        %643 = vmatpush1.bf16.msra.mxu0 %v589
        %644 = vmatprep.subr.bf16.mxu0 0
        %645 = vmatpush1.bf16.msra.mxu0 0
        %646 = vmatprep.subr.bf16.mxu0 0
        %647 = vmatpush1.bf16.msra.mxu0 0
        %648 = vmatprep.subr.bf16.mxu0 0
        %649 = vmatpush1.bf16.msra.mxu0 0
        %650 = vmatprep.subr.bf16.mxu0 0
        %651 = vmatpush1.bf16.msra.mxu0 0
        %652 = vmatprep.subr.bf16.mxu0 0
        %653 = vmatpush1.bf16.msra.mxu0 0
        %654 = vmatprep.subr.bf16.mxu0 0
        %655 = vmatpush1.bf16.msra.mxu0 0
        %656 = vmatprep.subr.bf16.mxu0 0
        %657 = vmatpush1.bf16.msra.mxu0 0
        %658 = vmatprep.subr.bf16.mxu0 0
        %659 = vmatpush1.bf16.msra.mxu0 0
        %660 = vmatprep.subr.bf16.mxu0 0
        %661 = vmatpush1.bf16.msra.mxu0 0
        %662 = vmatprep.subr.bf16.mxu0 0
        %663 = vmatpush1.bf16.msra.mxu0 0
        %664 = vmatprep.subr.bf16.mxu0 0
        %665 = vmatpush1.bf16.msra.mxu0 0
        %666 = vmatprep.mubr.bf16.mxu0 0
        %667 = vmatmul.mubr.bf16.gmra.mrb[0].mxu0 %v580
        %v668 = vpop.f32.mrb[0].mxu0
        %v669 = vadd.f32 %v566, %v668
        %v670 = vpop.f32.mrb[0].mxu0
        %v671 = vpop.f32.mrb[0].mxu0
        %v672 = vadd.f32 %v571, %v671
        %v673 = vpop.f32.mrb[0].mxu0
        %674 = vdwg.mxu0
        %v675 = vld [vmem:[%s3] sm:$0xf]
        %v676 = vld [vmem:[%s308] sm:$0xff]
        %v677 = vld [vmem:[%s308 + $0x8] sm:$0xf]
        %v680 = vunpack.c.l.b16 %v676
        %v681 = vunpack.c.h.b16 %v676
        %v682 = vunpack.c.l.b16 %v677
        %v683 = vpack.c.b16 %v680, %v680
        %v684 = vpack.c.b16 %v681, %v681
        %v685 = vpack.c.b16 %v682, %v682
        %v687 = vsel %vm367, %v675, 0
        %v690 = vsel %vm371, %v683, 0
        %v693 = vsel %vm371, %v684, 0
        %v696 = vsel %vm371, %v685, 0
        %698 = vmatprep.subr.bf16.mxu0 %v693
        %699 = vmatpush1.bf16.msra.mxu0 %v690
        %700 = vmatprep.subr.bf16.mxu0 0
        %701 = vmatpush1.bf16.msra.mxu0 0
        %702 = vmatprep.subr.bf16.mxu0 0
        %703 = vmatpush1.bf16.msra.mxu0 0
        %704 = vmatprep.subr.bf16.mxu0 0
        %705 = vmatpush1.bf16.msra.mxu0 0
        %706 = vmatprep.subr.bf16.mxu0 0
        %707 = vmatpush1.bf16.msra.mxu0 0
        %708 = vmatprep.subr.bf16.mxu0 0
        %709 = vmatpush1.bf16.msra.mxu0 0
        %710 = vmatprep.subr.bf16.mxu0 0
        %711 = vmatpush1.bf16.msra.mxu0 0
        %712 = vmatprep.subr.bf16.mxu0 0
        %713 = vmatpush1.bf16.msra.mxu0 0
        %714 = vmatprep.subr.bf16.mxu0 0
        %715 = vmatpush1.bf16.msra.mxu0 0
        %716 = vmatprep.subr.bf16.mxu0 0
        %717 = vmatpush1.bf16.msra.mxu0 0
        %718 = vmatprep.subr.bf16.mxu0 0
        %719 = vmatpush1.bf16.msra.mxu0 0
        %720 = vmatprep.subr.bf16.mxu0 0
        %721 = vmatpush1.bf16.msra.mxu0 0
        %722 = vmatprep.subr.bf16.mxu0 0
        %723 = vmatpush1.bf16.msra.mxu0 0
        %724 = vmatprep.subr.bf16.mxu0 0
        %725 = vmatpush1.bf16.msra.mxu0 0
        %726 = vmatprep.subr.bf16.mxu0 0
        %727 = vmatpush1.bf16.msra.mxu0 0
        %728 = vmatprep.subr.bf16.mxu0 0
        %729 = vmatpush1.bf16.msra.mxu0 0
        %730 = vmatprep.mubr.bf16.mxu0 0
        %731 = vmatmul.mubr.bf16.gmra.mrb[0].mxu0 %v687
        %v732 = vpop.f32.mrb[0].mxu0
        %v733 = vadd.f32 0.0, %v732
        %v734 = vpop.f32.mrb[0].mxu0
        %v735 = vadd.f32 0.0, %v734
        %v736 = vpop.f32.mrb[0].mxu0
        %v737 = vpop.f32.mrb[0].mxu0
        %738 = vdwg.mxu0
        %739 = vmatprep.subr.bf16.mxu0 0
        %740 = vmatpush1.bf16.msra.mxu0 %v696
        %741 = vmatprep.subr.bf16.mxu0 0
        %742 = vmatpush1.bf16.msra.mxu0 0
        %743 = vmatprep.subr.bf16.mxu0 0
        %744 = vmatpush1.bf16.msra.mxu0 0
        %745 = vmatprep.subr.bf16.mxu0 0
        %746 = vmatpush1.bf16.msra.mxu0 0
        %747 = vmatprep.subr.bf16.mxu0 0
        %748 = vmatpush1.bf16.msra.mxu0 0
        %749 = vmatprep.subr.bf16.mxu0 0
        %750 = vmatpush1.bf16.msra.mxu0 0
        %751 = vmatprep.subr.bf16.mxu0 0
        %752 = vmatpush1.bf16.msra.mxu0 0
        %753 = vmatprep.subr.bf16.mxu0 0
        %754 = vmatpush1.bf16.msra.mxu0 0
        %755 = vmatprep.subr.bf16.mxu0 0
        %756 = vmatpush1.bf16.msra.mxu0 0
        %757 = vmatprep.subr.bf16.mxu0 0
        %758 = vmatpush1.bf16.msra.mxu0 0
        %759 = vmatprep.subr.bf16.mxu0 0
        %760 = vmatpush1.bf16.msra.mxu0 0
        %761 = vmatprep.subr.bf16.mxu0 0
        %762 = vmatpush1.bf16.msra.mxu0 0
        %763 = vmatprep.subr.bf16.mxu0 0
        %764 = vmatpush1.bf16.msra.mxu0 0
        %765 = vmatprep.subr.bf16.mxu0 0
        %766 = vmatpush1.bf16.msra.mxu0 0
        %767 = vmatprep.subr.bf16.mxu0 0
        %768 = vmatpush1.bf16.msra.mxu0 0
        %769 = vmatprep.subr.bf16.mxu0 0
        %770 = vmatpush1.bf16.msra.mxu0 0
        %771 = vmatprep.mubr.bf16.mxu0 0
        %772 = vmatmul.mubr.bf16.gmra.mrb[0].mxu0 %v687
        %v773 = vpop.f32.mrb[0].mxu0
        %v774 = vadd.f32 0.0, %v773
        %v775 = vpop.f32.mrb[0].mxu0
        %v776 = vpop.f32.mrb[0].mxu0
        %v777 = vpop.f32.mrb[0].mxu0
        %778 = vdwg.mxu0
        %v779 = vld [vmem:[%s6] sm:$0xf]
        %v780 = vld [vmem:[%s6 + $0x4] sm:$0xf]
        %v781 = vpack.c.bf16 %v733, %v733
        %v782 = vpack.c.bf16 %v735, %v735
        %v783 = vpack.c.bf16 %v774, %v774
        %v786 = vunpack.c.l.b16 %v779
        %v787 = vunpack.c.l.b16 %v780
        %v788 = vpack.c.b16 %v787, %v786
        %v790 = vsel %vm367, %v788, 0
        %v793 = vsel %vm371, %v781, 0
        %v796 = vsel %vm371, %v782, 0
        %v799 = vsel %vm371, %v783, 0
        %801 = vmatprep.subr.bf16.mxu0 %v796
        %802 = vmatpush1.bf16.msra.mxu0 %v793
        %803 = vmatprep.subr.bf16.mxu0 0
        %804 = vmatpush1.bf16.msra.mxu0 0
        %805 = vmatprep.subr.bf16.mxu0 0
        %806 = vmatpush1.bf16.msra.mxu0 0
        %807 = vmatprep.subr.bf16.mxu0 0
        %808 = vmatpush1.bf16.msra.mxu0 0
        %809 = vmatprep.subr.bf16.mxu0 0
        %810 = vmatpush1.bf16.msra.mxu0 0
        %811 = vmatprep.subr.bf16.mxu0 0
        %812 = vmatpush1.bf16.msra.mxu0 0
        %813 = vmatprep.subr.bf16.mxu0 0
        %814 = vmatpush1.bf16.msra.mxu0 0
        %815 = vmatprep.subr.bf16.mxu0 0
        %816 = vmatpush1.bf16.msra.mxu0 0
        %817 = vmatprep.subr.bf16.mxu0 0
        %818 = vmatpush1.bf16.msra.mxu0 0
        %819 = vmatprep.subr.bf16.mxu0 0
        %820 = vmatpush1.bf16.msra.mxu0 0
        %821 = vmatprep.subr.bf16.mxu0 0
        %822 = vmatpush1.bf16.msra.mxu0 0
        %823 = vmatprep.subr.bf16.mxu0 0
        %824 = vmatpush1.bf16.msra.mxu0 0
        %825 = vmatprep.subr.bf16.mxu0 0
        %826 = vmatpush1.bf16.msra.mxu0 0
        %827 = vmatprep.subr.bf16.mxu0 0
        %828 = vmatpush1.bf16.msra.mxu0 0
        %829 = vmatprep.subr.bf16.mxu0 0
        %830 = vmatpush1.bf16.msra.mxu0 0
        %831 = vmatprep.subr.bf16.mxu0 0
        %832 = vmatpush1.bf16.msra.mxu0 0
        %833 = vmatprep.mubr.bf16.mxu0 0
        %834 = vmatmul.mubr.bf16.gmra.mrb[0].mxu0 %v790
        %v835 = vpop.f32.mrb[0].mxu0
        %v836 = vadd.f32 0.0, %v835
        %v837 = vpop.f32.mrb[0].mxu0
        %v838 = vadd.f32 0.0, %v837
        %v839 = vpop.f32.mrb[0].mxu0
        %v840 = vadd.f32 0.0, %v839
        %v841 = vpop.f32.mrb[0].mxu0
        %v842 = vadd.f32 0.0, %v841
        %843 = vdwg.mxu0
        %844 = vmatprep.subr.bf16.mxu0 0
        %845 = vmatpush1.bf16.msra.mxu0 %v799
        %846 = vmatprep.subr.bf16.mxu0 0
        %847 = vmatpush1.bf16.msra.mxu0 0
        %848 = vmatprep.subr.bf16.mxu0 0
        %849 = vmatpush1.bf16.msra.mxu0 0
        %850 = vmatprep.subr.bf16.mxu0 0
        %851 = vmatpush1.bf16.msra.mxu0 0
        %852 = vmatprep.subr.bf16.mxu0 0
        %853 = vmatpush1.bf16.msra.mxu0 0
        %854 = vmatprep.subr.bf16.mxu0 0
        %855 = vmatpush1.bf16.msra.mxu0 0
        %856 = vmatprep.subr.bf16.mxu0 0
        %857 = vmatpush1.bf16.msra.mxu0 0
        %858 = vmatprep.subr.bf16.mxu0 0
        %859 = vmatpush1.bf16.msra.mxu0 0
        %860 = vmatprep.subr.bf16.mxu0 0
        %861 = vmatpush1.bf16.msra.mxu0 0
        %862 = vmatprep.subr.bf16.mxu0 0
        %863 = vmatpush1.bf16.msra.mxu0 0
        %864 = vmatprep.subr.bf16.mxu0 0
        %865 = vmatpush1.bf16.msra.mxu0 0
        %866 = vmatprep.subr.bf16.mxu0 0
        %867 = vmatpush1.bf16.msra.mxu0 0
        %868 = vmatprep.subr.bf16.mxu0 0
        %869 = vmatpush1.bf16.msra.mxu0 0
        %870 = vmatprep.subr.bf16.mxu0 0
        %871 = vmatpush1.bf16.msra.mxu0 0
        %872 = vmatprep.subr.bf16.mxu0 0
        %873 = vmatpush1.bf16.msra.mxu0 0
        %874 = vmatprep.subr.bf16.mxu0 0
        %875 = vmatpush1.bf16.msra.mxu0 0
        %876 = vmatprep.mubr.bf16.mxu0 0
        %877 = vmatmul.mubr.bf16.gmra.mrb[0].mxu0 %v790
        %v878 = vpop.f32.mrb[0].mxu0
        %v879 = vadd.f32 0.0, %v878
        %v880 = vpop.f32.mrb[0].mxu0
        %v881 = vpop.f32.mrb[0].mxu0
        %v882 = vadd.f32 0.0, %v881
        %v883 = vpop.f32.mrb[0].mxu0
        %884 = vdwg.mxu0
        %v885 = vld [vmem:[%s7] sm:$0x7]
        %v887 = vlaneseq
        %v888 = vshrl.u32 %v887, 7
        %v889 = vsub.s32 0, %v888
        %v890 = vrot.slane %v885, %v889
        %v891 = vlaneseq
        %v892 = vshrl.u32 %v891, 7
        %v893 = vsub.s32 1, %v892
        %v894 = vrot.slane %v885, %v893
        %v895 = vlaneseq
        %v896 = vshrl.u32 %v895, 7
        %v897 = vsub.s32 2, %v896
        %v898 = vrot.slane %v885, %v897
        %v902 = vmul.f32 %v626, %v890
        %v903 = vmul.f32 %v628, %v894
        %v904 = vmul.f32 %v669, %v898
        %v905 = vmul.f32 %v630, %v890
        %v906 = vmul.f32 %v632, %v894
        %v907 = vmul.f32 %v672, %v898
        %v908 = vadd.f32 %v902, %v903
        %v909 = vadd.f32 %v908, %v904
        %910 = vadd.xlane.f32.xlu0 %v909
        %v911 = vpop.xlane.xlu0 %910
        %v912 = vadd.f32 %v905, %v906
        %v913 = vadd.f32 %v912, %v907
        %914 = vadd.xlane.f32.xlu0 %v913
        %v915 = vpop.xlane.xlu0 %914
        %v916 = vmul.f32 %v911, 0.00390625
        %v917 = vmul.f32 %v915, 0.00390625
        %v918 = vmul.f32 %v836, %v890
        %v919 = vmul.f32 %v838, %v894
        %v920 = vmul.f32 %v879, %v898
        %v921 = vmul.f32 %v840, %v890
        %v922 = vmul.f32 %v842, %v894
        %v923 = vmul.f32 %v882, %v898
        %v924 = vadd.f32 %v918, %v919
        %v925 = vadd.f32 %v924, %v920
        %926 = vadd.xlane.f32.xlu0 %v925
        %v927 = vpop.xlane.xlu0 %926
        %v928 = vadd.f32 %v921, %v922
        %v929 = vadd.f32 %v928, %v923
        %930 = vadd.xlane.f32.xlu0 %v929
        %v931 = vpop.xlane.xlu0 %930
        %v932 = vmul.f32 %v927, 0.00390625
        %v933 = vmul.f32 %v931, 0.00390625
        %v934 = vmax.f32 %v916, %v917
        %v935 = vrot.slane %v934, 4
        %v936 = vmax.f32 %v934, %v935
        %v937 = vrot.slane %v936, 2
        %v938 = vmax.f32 %v936, %v937
        %v939 = vrot.slane %v938, 1
        %v940 = vmax.f32 %v938, %v939
        %v941 = vmax.f32 %v932, %v933
        %v942 = vrot.slane %v941, 4
        %v943 = vmax.f32 %v941, %v942
        %v944 = vrot.slane %v943, 2
        %v945 = vmax.f32 %v943, %v944
        %v946 = vrot.slane %v945, 1
        %v947 = vmax.f32 %v945, %v946
        %v948 = vmax.f32 %v940, %v947
        %v949 = vsub.f32 %v916, %v948
        %v950 = vsub.f32 %v917, %v948
        %v951 = vmul.f32 %v949, 1.442695
        %v952 = vpow.pop %v951
        %v953 = vmul.f32 %v950, 1.442695
        %v954 = vpow.pop %v953
        %v955 = vsub.f32 %v932, %v948
        %v956 = vsub.f32 %v933, %v948
        %v957 = vmul.f32 %v955, 1.442695
        %v958 = vpow.pop %v957
        %v959 = vmul.f32 %v956, 1.442695
        %v960 = vpow.pop %v959
        %v961 = vadd.f32 %v952, %v954
        %v962 = vrot.slane %v961, 4
        %v963 = vadd.f32 %v961, %v962
        %v964 = vrot.slane %v963, 2
        %v965 = vadd.f32 %v963, %v964
        %v966 = vrot.slane %v965, 1
        %v967 = vadd.f32 %v965, %v966
        %v968 = vadd.f32 %v958, %v960
        %v969 = vrot.slane %v968, 4
        %v970 = vadd.f32 %v968, %v969
        %v971 = vrot.slane %v970, 2
        %v972 = vadd.f32 %v970, %v971
        %v973 = vrot.slane %v972, 1
        %v974 = vadd.f32 %v972, %v973
        %v975 = vadd.f32 %v967, %v974
        %v976 = vrcp.pop %v975
        %v977 = vmul.f32 %v952, %v976
        %v978 = vmul.f32 %v954, %v976
        %v979 = vmul.f32 %v958, %v976
        %v980 = vmul.f32 %v960, %v976
        %v981 = vmul.f32 %v626, %v977
        %v982 = vmul.f32 %v628, %v977
        %v983 = vmul.f32 %v669, %v977
        %v984 = vmul.f32 %v630, %v978
        %v985 = vmul.f32 %v632, %v978
        %v986 = vmul.f32 %v672, %v978
        %v987 = vmul.f32 %v836, %v979
        %v988 = vmul.f32 %v838, %v979
        %v989 = vmul.f32 %v879, %v979
        %v990 = vmul.f32 %v840, %v980
        %v991 = vmul.f32 %v842, %v980
        %v992 = vmul.f32 %v882, %v980
        %v993 = vadd.f32 %v981, %v987
        %v994 = vadd.f32 %v982, %v988
        %v995 = vadd.f32 %v983, %v989
        %v996 = vadd.f32 %v984, %v990
        %v997 = vadd.f32 %v985, %v991
        %v998 = vadd.f32 %v986, %v992
        %999 = vst [vmem:[%s349] sm:$0xff] %v993
        %1000 = vst [vmem:[%s349 + $0x8] sm:$0xff] %v994
        %1001 = vst [vmem:[%s349 + $0x10] sm:$0xff] %v995
        %1002 = vst [vmem:[%s349 + $0x18] sm:$0xff] %v996
        %1003 = vst [vmem:[%s349 + $0x20] sm:$0xff] %v997
        %1004 = vst [vmem:[%s349 + $0x28] sm:$0xff] %v998
        %s1005 = sand.u32 %s212, 1
        %s1006 = scalar_lea.sflag [#allocation4], %s1005
        %s1007 = sand.u32 %s212, 1
        %s1008 = smul.addr %s1007, 48
        %s1009 = scalar_lea.vmem [#allocation7], %s1008
        // Predicated region
        $region61: #{tpu_custom_call.1} parent=51 // pred_check
          %p1010 = pneg %p222
        $region62: #{tpu_custom_call.1} parent=51 // pred_check_branch
          %1012 = sbr.rel (%p1010) target = $region64
        $region63: #{tpu_custom_call.1} parent=51 // pred_region
          %s1014 = ssub.s32 768, 768
          %1015 = vsyncadd %s1006, %s1014
          %s1016 = smul.addr %s26, 6
          %s1017 = smul.addr %s1016, 128
          %s1018 = scalar_lea.hbm %s8, %s1017
          %s1019 = sshll.u32 %s1009, 4
          %s1020 = int_to_ptr.vmem [resolvable:$true] %s1019
          %1025 = dma.vmem_to_hbm [thread:$0]  %s1020, 768, %s1018, %s1006, 384, 384, 24
        $region64: #{tpu_custom_call.1} parent=51 // pred_fallthru
          _
      $region52: #{tpu_custom_call.1} parent=5 // pred_fallthru
        _
      %p1026 = scmp.le.s32.totalorder 2, %s21
      // Predicated region
      $region65: #{tpu_custom_call.1} parent=5 // pred_check
        %p1027 = pneg %p1026
      $region66: #{tpu_custom_call.1} parent=5 // pred_check_branch
        %1029 = sbr.rel (%p1027) target = $region68
      $region67: #{tpu_custom_call.1} parent=5 // pred_region
        %s1030 = ssub.s32 %s21, 2
        // Predicated region
        $region69: #{tpu_custom_call.1} parent=67 // pred_check
          %p1031 = pneg %p228
        $region70: #{tpu_custom_call.1} parent=67 // pred_check_branch
          %1033 = sbr.rel (%p1031) target = $region72
        $region71: #{tpu_custom_call.1} parent=67 // pred_region
          %s1034 = sand.u32 %s213, 1
          %s1035 = scalar_lea.sflag [#allocation4], %s1034
          %s1036 = sand.u32 %s213, 1
          %s1037 = smul.addr %s1036, 48
          %s1038 = scalar_lea.vmem [#allocation7], %s1037
          %1039 = dma.done %s1035, 768
        $region72: #{tpu_custom_call.1} parent=67 // pred_fallthru
          _
      $region68: #{tpu_custom_call.1} parent=5 // pred_fallthru
        _
    $region6: #{tpu_custom_call.1} parent=1 // loop_footer
      %s25 = sadd.s32 1, %s21
    $region7: #{tpu_custom_call.1} parent=1 // loop_footer_branch
      %20 = sbr.rel target = $region3
    $region8: #{tpu_custom_call.1} parent=1 // loop_exit
      _
    %1040 = vsyncpa [#allocation3], 1
    %s1041 = scalar_lea.sflag [#allocation3], 1
    %1042 = vsyncpa %s1041, 1
    %1043 = vsyncpa [#allocation6], 1
    %1044 = vsyncpa [#allocation4], 1
    %s1045 = scalar_lea.sflag [#allocation4], 1
    %1046 = vsyncpa %s1045, 1

</llo_original>
